<compile_context>
chip_gen: v5e
topology: v5e:2x2
jax: 0.10.0
libtpu: 0.0.40
codegen_flags: <defaults>
</compile_context>

<pallas_src>
import jax
import jax.numpy as jnp
from jax import lax
from jax.experimental import pallas as pl
from jax.experimental.pallas import tpu as pltpu

STOCH = 16          # stochastic-state size
DETER = 16          # deterministic-state size
HIDDEN = 32         # hidden size
TM_MAX = 1024       # max batch rows per grid step (lane axis of the activations)

# Contract the last dim of both operands (A @ B^T), i.e. the q @ k^T pattern.
_NT = (((1,), (1,)), ((), ()))


# ----------------------------- Pallas kernel ------------------------------ #
def _elu(x):
    # ELU(alpha=1): x if x > 0 else exp(x) - 1   (EUP exp, VPU select)
    return jnp.where(x > 0, x, jnp.exp(x) - 1.0)


def _continuo_kernel(s_ref, d_ref, w1sT_ref, w1dT_ref, b1_ref,
                     w2T_ref, b2_ref, w3T_ref, b3_ref,
                     logit_ref, prob_ref):
    # s_ref: (TM, S)  d_ref: (TM, D)                row-major input tiles
    # w1sT_ref: (H, S)  w1dT_ref: (H, D)  b1_ref: (H, 1)
    # w2T_ref:  (H, H)                    b2_ref: (H, 1)
    # w3T_ref:  (1, H)                    b3_ref: (1,) scalar in SMEM
    # logit_ref / prob_ref: (1, TM)       batch rows on the lane axis

    # Layer 1 (fused concat): h1^T = W1s^T @ s^T + W1d^T @ d^T + b1.
    # The transpose of the big (TM, S) tiles is folded into the matmul via the
    # NT dimension numbers; activations stay (H, TM) lane-dense throughout.
    h = lax.dot_general(w1sT_ref[...], s_ref[...], _NT,
                        preferred_element_type=jnp.float32)
    h = h + lax.dot_general(w1dT_ref[...], d_ref[...], _NT,
                            preferred_element_type=jnp.float32)
    h = _elu(h + b1_ref[...])                                     # (H, TM)

    # Layer 2: h2^T = W2^T @ h1^T + b2.
    h = jnp.dot(w2T_ref[...], h, preferred_element_type=jnp.float32)
    h = _elu(h + b2_ref[...])                                     # (H, TM)

    # Layer 3 (hidden -> 1): logits^T = W3^T @ h2^T + b3  ->  (1, TM), lane dense.
    logits = jnp.dot(w3T_ref[...], h,
                     preferred_element_type=jnp.float32) + b3_ref[0]

    logit_ref[...] = logits.astype(logit_ref.dtype)
    # Bernoulli probability (distribution parameter); sigmoid via one EUP tanh.
    prob_ref[...] = (0.5 * jnp.tanh(0.5 * logits) + 0.5).astype(prob_ref.dtype)


# ------------------------------- forward ----------------------------------- #
def _round_up(x, m):
    return ((x + m - 1) // m) * m


def _pick_tm(m_rows, tm_max=TM_MAX):
    """Batch-tile size: large tiles amortize the ~0.35us per-grid-step overhead,
    but keep >=2 grid steps when there is enough work so the 'parallel' batch
    axis can split across v7x's two TensorCores."""
    if m_rows <= tm_max:
        return max(128, _round_up(m_rows, 128))
    if m_rows <= 2 * tm_max:
        return max(128, _round_up((m_rows + 1) // 2, 128))
    return tm_max


@jax.jit
def continuo_forward(stoch_state, deterministic, params):
    """Returns (logits, probs) with logits shaped batch_shape + (1,).

    Matches torch: x = cat(stoch, det, -1); net(x).reshape(*batch_shape, 1).
    """
    w1, b1, w2, b2, w3, b3 = params
    S = stoch_state.shape[-1]
    D = deterministic.shape[-1]
    H = w2.shape[0]

    batch_shape = stoch_state.shape[:-1]
    if not batch_shape:
        batch_shape = (1,)

    # NOTE: if upstream tensors were bf16 we could DMA them as bf16 (f32 MXU
    # accumulation stays); they are f32 here so these casts are no-ops.
    s2 = stoch_state.reshape(-1, S).astype(jnp.float32)
    d2 = deterministic.reshape(-1, D).astype(jnp.float32)
    M = s2.shape[0]
    TM = _pick_tm(M)
    M_pad = _round_up(M, TM)
    if M_pad != M:
        s2 = jnp.pad(s2, ((0, M_pad - M), (0, 0)))
        d2 = jnp.pad(d2, ((0, M_pad - M), (0, 0)))

    # Tiny (<=32x32) weight transposes so the kernel's matmuls are weight-streamed
    # and lane-dense; splitting W1 row-wise fuses torch.cat((stoch, det), -1).
    w1sT = jnp.transpose(w1[:S]).astype(jnp.float32)      # (H, S)
    w1dT = jnp.transpose(w1[S:]).astype(jnp.float32)      # (H, D)
    b1c = b1.reshape(H, 1).astype(jnp.float32)
    w2T = jnp.transpose(w2).astype(jnp.float32)           # (H, H)
    b2c = b2.reshape(H, 1).astype(jnp.float32)
    w3T = w3.reshape(H, 1).T.astype(jnp.float32)           # (1, H)
    b3s = b3.reshape(1).astype(jnp.float32)                 # scalar -> SMEM

    cost = pl.CostEstimate(
        flops=2 * M_pad * (H * (S + D) + H * H + H),
        transcendentals=M_pad * (2 * H + 1),
        bytes_accessed=4 * (M_pad * (S + D) + 2 * M_pad
                            + (S + D) * H + H * H + 2 * H + 1),
    )

    logits, probs = pl.pallas_call(
        _continuo_kernel,
        out_shape=(jax.ShapeDtypeStruct((1, M_pad), jnp.float32),
                   jax.ShapeDtypeStruct((1, M_pad), jnp.float32)),
        grid_spec=pltpu.PrefetchScalarGridSpec(
            num_scalar_prefetch=0,
            grid=(M_pad // TM,),
            in_specs=[
                pl.BlockSpec((TM, S), lambda i: (i, 0)),      # stoch rows
                pl.BlockSpec((TM, D), lambda i: (i, 0)),      # det rows
                pl.BlockSpec((H, S), lambda i: (0, 0)),       # W1_s^T (resident)
                pl.BlockSpec((H, D), lambda i: (0, 0)),       # W1_d^T (resident)
                pl.BlockSpec((H, 1), lambda i: (0, 0)),       # b1 column
                pl.BlockSpec((H, H), lambda i: (0, 0)),       # W2^T  (resident)
                pl.BlockSpec((H, 1), lambda i: (0, 0)),       # b2 column
                pl.BlockSpec((1, H), lambda i: (0, 0)),       # W3^T row
                pl.BlockSpec(memory_space=pltpu.MemorySpace.SMEM),  # b3 scalar
            ],
            out_specs=(pl.BlockSpec((1, TM), lambda i: (0, i)),
                       pl.BlockSpec((1, TM), lambda i: (0, i))),
        ),
        compiler_params=pltpu.CompilerParams(
            dimension_semantics=("parallel",)),
        cost_estimate=cost,
    )(s2, d2, w1sT, w1dT, b1c, w2T, b2c, w3T, b3s)

    logits = logits[0, :M].reshape(tuple(batch_shape) + (1,))
    probs = probs[0, :M].reshape(tuple(batch_shape) + (1,))
    # TODO(synk): torch.distributions.Independent(Bernoulli(logits=x), 1) has no
    # Pallas/JAX-array equivalent; we return (logits, probs) instead.
    return logits, probs


# ------------------------------ parameters -------------------------------- #
def init_params(key, input_size=STOCH + DETER, hidden_size=HIDDEN):
    """torch.nn.Linear-style U(-1/sqrt(fan_in), 1/sqrt(fan_in)) init, (in, out) layout."""
    def linear(k, fin, fout):
        kw, kb = jax.random.split(k)
        bound = 1.0 / (fin ** 0.5)
        w = jax.random.uniform(kw, (fin, fout), minval=-bound, maxval=bound,
                               dtype=jnp.float32)
        b = jax.random.uniform(kb, (fout,), minval=-bound, maxval=bound,
                               dtype=jnp.float32)
        return w, b

    k1, k2, k3 = jax.random.split(key, 3)
    w1, b1 = linear(k1, input_size, hidden_size)
    w2, b2 = linear(k2, hidden_size, hidden_size)
    w3, b3 = linear(k3, hidden_size, 1)
    return (w1, b1, w2, b2, w3, b3)


# ------------------------------ reference ---------------------------------- #
def continuo_reference(stoch_state, deterministic, params):
    """Pure-JAX reference for validation."""
    w1, b1, w2, b2, w3, b3 = params
    x = jnp.concatenate([stoch_state, deterministic], axis=-1)
    batch_shape = x.shape[:-1]
    if not batch_shape:
        batch_shape = (1,)
    x = x.reshape(-1, x.shape[-1])
    h = jax.nn.elu(x @ w1 + b1)
    h = jax.nn.elu(h @ w2 + b2)
    logits = (h @ w3 + b3).reshape(tuple(batch_shape) + (1,))
    return logits, jax.nn.sigmoid(logits)


def _check(batch_shape, params, key):
    ks, kd = jax.random.split(key)
    stoch = jax.random.normal(ks, batch_shape + (STOCH,), dtype=jnp.float32)
    deter = jax.random.normal(kd, batch_shape + (DETER,), dtype=jnp.float32)

    logits, probs = jax.block_until_ready(continuo_forward(stoch, deter, params))
    ref_logits, ref_probs = continuo_reference(stoch, deter, params)

    assert logits.shape == batch_shape + (1,), logits.shape
    assert probs.shape == batch_shape + (1,), probs.shape
    assert jnp.allclose(logits, ref_logits, rtol=1e-4, atol=1e-4), float(
        jnp.max(jnp.abs(logits - ref_logits)))
    assert jnp.allclose(probs, ref_probs, rtol=1e-4, atol=1e-4), float(
        jnp.max(jnp.abs(probs - ref_probs)))


if __name__ == "__main__":
    key = jax.random.PRNGKey(0)
    kp, k_small, k_big = jax.random.split(key, 3)
    params = init_params(kp)

    # Small shape consistent with the module (single-step grid, padded to 128 rows).
    _check((2, 8), params, k_small)
    # Larger batch: exercises padding + a 2-step grid (v7x megacore split path).
    _check((5, 300), params, k_big)

    print("KERNEL_OK")
</pallas_src>

<mosaic_0001>
module attributes {stable_mosaic.version = 11 : i64} {
  func.func @_continuo_kernel(%arg0: i32, %arg1: memref<128x16xf32, #tpu.memory_space<vmem>>, %arg2: memref<128x16xf32, #tpu.memory_space<vmem>>, %arg3: memref<32x16xf32, #tpu.memory_space<vmem>>, %arg4: memref<32x16xf32, #tpu.memory_space<vmem>>, %arg5: memref<32x1xf32, #tpu.memory_space<vmem>>, %arg6: memref<32x32xf32, #tpu.memory_space<vmem>>, %arg7: memref<32x1xf32, #tpu.memory_space<vmem>>, %arg8: memref<1x32xf32, #tpu.memory_space<vmem>>, %arg9: memref<1xf32, #tpu.memory_space<smem>>, %arg10: memref<1x128xf32, #tpu.memory_space<vmem>>, %arg11: memref<1x128xf32, #tpu.memory_space<vmem>>) attributes {dimension_semantics = [#tpu.dimension_semantics<parallel>], iteration_bounds = array<i64: 1>, scalar_prefetch = 0 : i64, scratch_operands = 0 : i64, tpu.core_type = #tpu.core_type<tc>, window_params = [{transform_indices = @transform_0, window_bounds = array<i64: 128, 16>}, {transform_indices = @transform_1, window_bounds = array<i64: 128, 16>}, {pipeline_mode = #tpu.pipeline_mode<synchronous>, transform_indices = @transform_2, window_bounds = array<i64: 32, 16>}, {pipeline_mode = #tpu.pipeline_mode<synchronous>, transform_indices = @transform_3, window_bounds = array<i64: 32, 16>}, {pipeline_mode = #tpu.pipeline_mode<synchronous>, transform_indices = @transform_4, window_bounds = array<i64: 32, 1>}, {pipeline_mode = #tpu.pipeline_mode<synchronous>, transform_indices = @transform_5, window_bounds = array<i64: 32, 32>}, {pipeline_mode = #tpu.pipeline_mode<synchronous>, transform_indices = @transform_6, window_bounds = array<i64: 32, 1>}, {pipeline_mode = #tpu.pipeline_mode<synchronous>, transform_indices = @transform_7, window_bounds = array<i64: 1, 32>}, {transform_indices = @transform_8, window_bounds = array<i64: 1>}, {transform_indices = @transform_9, window_bounds = array<i64: 1, 128>}, {transform_indices = @transform_10, window_bounds = array<i64: 1, 128>}]} {
    %c0 = arith.constant 0 : index
    %c0_0 = arith.constant 0 : index
    %0 = vector.load %arg3[%c0, %c0_0] : memref<32x16xf32, #tpu.memory_space<vmem>>, vector<32x16xf32>
    %c0_1 = arith.constant 0 : index
    %c0_2 = arith.constant 0 : index
    %1 = vector.load %arg1[%c0_1, %c0_2] : memref<128x16xf32, #tpu.memory_space<vmem>>, vector<128x16xf32>
    %cst = arith.constant dense<0.000000e+00> : vector<32x128xf32>
    %2 = tpu.matmul %0, %1, %cst {dimension_numbers = #tpu.dot_dimension_numbers<[1], [1], [0], [0], [0, 0, 1, 0], [], []>} : vector<32x16xf32>, vector<128x16xf32>, vector<32x128xf32> -> vector<32x128xf32>
    %c0_3 = arith.constant 0 : index
    %c0_4 = arith.constant 0 : index
    %3 = vector.load %arg4[%c0_3, %c0_4] : memref<32x16xf32, #tpu.memory_space<vmem>>, vector<32x16xf32>
    %c0_5 = arith.constant 0 : index
    %c0_6 = arith.constant 0 : index
    %4 = vector.load %arg2[%c0_5, %c0_6] : memref<128x16xf32, #tpu.memory_space<vmem>>, vector<128x16xf32>
    %cst_7 = arith.constant dense<0.000000e+00> : vector<32x128xf32>
    %5 = tpu.matmul %3, %4, %cst_7 {dimension_numbers = #tpu.dot_dimension_numbers<[1], [1], [0], [0], [0, 0, 1, 0], [], []>} : vector<32x16xf32>, vector<128x16xf32>, vector<32x128xf32> -> vector<32x128xf32>
    %6 = arith.addf %2, %5 : vector<32x128xf32>
    %c0_8 = arith.constant 0 : index
    %c0_9 = arith.constant 0 : index
    %7 = vector.load %arg5[%c0_8, %c0_9] : memref<32x1xf32, #tpu.memory_space<vmem>>, vector<32x1xf32>
    %8 = vector.broadcast %7 : vector<32x1xf32> to vector<32x128xf32>
    %9 = arith.addf %6, %8 : vector<32x128xf32>
    %cst_10 = arith.constant 0.000000e+00 : f32
    %10 = vector.broadcast %cst_10 : f32 to vector<32x128xf32>
    %11 = arith.cmpf ogt, %9, %10 : vector<32x128xf32>
    %12 = math.exp %9 : vector<32x128xf32>
    %cst_11 = arith.constant 1.000000e+00 : f32
    %13 = vector.broadcast %cst_11 : f32 to vector<32x128xf32>
    %14 = arith.subf %12, %13 : vector<32x128xf32>
    %15 = arith.select %11, %9, %14 : vector<32x128xi1>, vector<32x128xf32>
    %c0_12 = arith.constant 0 : index
    %c0_13 = arith.constant 0 : index
    %16 = vector.load %arg6[%c0_12, %c0_13] : memref<32x32xf32, #tpu.memory_space<vmem>>, vector<32x32xf32>
    %cst_14 = arith.constant dense<0.000000e+00> : vector<32x128xf32>
    %17 = tpu.matmul %16, %15, %cst_14 {dimension_numbers = #tpu.dot_dimension_numbers<[1], [0], [0], [1], [0, 0, 1, 1], [], []>} : vector<32x32xf32>, vector<32x128xf32>, vector<32x128xf32> -> vector<32x128xf32>
    %c0_15 = arith.constant 0 : index
    %c0_16 = arith.constant 0 : index
    %18 = vector.load %arg7[%c0_15, %c0_16] : memref<32x1xf32, #tpu.memory_space<vmem>>, vector<32x1xf32>
    %19 = vector.broadcast %18 : vector<32x1xf32> to vector<32x128xf32>
    %20 = arith.addf %17, %19 : vector<32x128xf32>
    %cst_17 = arith.constant 0.000000e+00 : f32
    %21 = vector.broadcast %cst_17 : f32 to vector<32x128xf32>
    %22 = arith.cmpf ogt, %20, %21 : vector<32x128xf32>
    %23 = math.exp %20 : vector<32x128xf32>
    %cst_18 = arith.constant 1.000000e+00 : f32
    %24 = vector.broadcast %cst_18 : f32 to vector<32x128xf32>
    %25 = arith.subf %23, %24 : vector<32x128xf32>
    %26 = arith.select %22, %20, %25 : vector<32x128xi1>, vector<32x128xf32>
    %c0_19 = arith.constant 0 : index
    %c0_20 = arith.constant 0 : index
    %27 = vector.load %arg8[%c0_19, %c0_20] : memref<1x32xf32, #tpu.memory_space<vmem>>, vector<1x32xf32>
    %cst_21 = arith.constant dense<0.000000e+00> : vector<1x128xf32>
    %28 = tpu.matmul %27, %26, %cst_21 {dimension_numbers = #tpu.dot_dimension_numbers<[1], [0], [0], [1], [0, 0, 1, 1], [], []>} : vector<1x32xf32>, vector<32x128xf32>, vector<1x128xf32> -> vector<1x128xf32>
    %c0_22 = arith.constant 0 : index
    %29 = memref.load %arg9[%c0_22] : memref<1xf32, #tpu.memory_space<smem>>
    %30 = vector.broadcast %29 : f32 to vector<1x128xf32>
    %31 = arith.addf %28, %30 : vector<1x128xf32>
    %c0_23 = arith.constant 0 : index
    %c0_24 = arith.constant 0 : index
    %32 = vector.load %arg10[%c0_23, %c0_24] : memref<1x128xf32, #tpu.memory_space<vmem>>, vector<1x128xf32>
    tpu.vector_store %arg10[%c0_23, %c0_24], %31 {strides = array<i32>} : memref<1x128xf32, #tpu.memory_space<vmem>>, vector<1x128xf32>,
    %cst_25 = arith.constant 5.000000e-01 : f32
    %33 = vector.broadcast %cst_25 : f32 to vector<1x128xf32>
    %34 = arith.mulf %33, %31 : vector<1x128xf32>
    %35 = math.tanh %34 : vector<1x128xf32>
    %cst_26 = arith.constant 5.000000e-01 : f32
    %36 = vector.broadcast %cst_26 : f32 to vector<1x128xf32>
    %37 = arith.mulf %36, %35 : vector<1x128xf32>
    %cst_27 = arith.constant 5.000000e-01 : f32
    %38 = vector.broadcast %cst_27 : f32 to vector<1x128xf32>
    %39 = arith.addf %37, %38 : vector<1x128xf32>
    %c0_28 = arith.constant 0 : index
    %c0_29 = arith.constant 0 : index
    %40 = vector.load %arg11[%c0_28, %c0_29] : memref<1x128xf32, #tpu.memory_space<vmem>>, vector<1x128xf32>
    tpu.vector_store %arg11[%c0_28, %c0_29], %39 {strides = array<i32>} : memref<1x128xf32, #tpu.memory_space<vmem>>, vector<1x128xf32>,
    return
  }
  func.func @transform_0(%arg0: i32) -> (i32, i32) {
    %c0_i32 = arith.constant 0 : i32
    %c0_i32_0 = arith.constant 0 : i32
    return %arg0, %c0_i32 : i32, i32
  }
  func.func @transform_1(%arg0: i32) -> (i32, i32) {
    %c0_i32 = arith.constant 0 : i32
    %c0_i32_0 = arith.constant 0 : i32
    return %arg0, %c0_i32 : i32, i32
  }
  func.func @transform_2(%arg0: i32) -> (i32, i32) {
    %c0_i32 = arith.constant 0 : i32
    %c0_i32_0 = arith.constant 0 : i32
    %c0_i32_1 = arith.constant 0 : i32
    return %c0_i32, %c0_i32_0 : i32, i32
  }
  func.func @transform_3(%arg0: i32) -> (i32, i32) {
    %c0_i32 = arith.constant 0 : i32
    %c0_i32_0 = arith.constant 0 : i32
    %c0_i32_1 = arith.constant 0 : i32
    return %c0_i32, %c0_i32_0 : i32, i32
  }
  func.func @transform_4(%arg0: i32) -> (i32, i32) {
    %c0_i32 = arith.constant 0 : i32
    %c0_i32_0 = arith.constant 0 : i32
    %c0_i32_1 = arith.constant 0 : i32
    return %c0_i32, %c0_i32_0 : i32, i32
  }
  func.func @transform_5(%arg0: i32) -> (i32, i32) {
    %c0_i32 = arith.constant 0 : i32
    %c0_i32_0 = arith.constant 0 : i32
    %c0_i32_1 = arith.constant 0 : i32
    return %c0_i32, %c0_i32_0 : i32, i32
  }
  func.func @transform_6(%arg0: i32) -> (i32, i32) {
    %c0_i32 = arith.constant 0 : i32
    %c0_i32_0 = arith.constant 0 : i32
    %c0_i32_1 = arith.constant 0 : i32
    return %c0_i32, %c0_i32_0 : i32, i32
  }
  func.func @transform_7(%arg0: i32) -> (i32, i32) {
    %c0_i32 = arith.constant 0 : i32
    %c0_i32_0 = arith.constant 0 : i32
    %c0_i32_1 = arith.constant 0 : i32
    return %c0_i32, %c0_i32_0 : i32, i32
  }
  func.func @transform_8(%arg0: i32) -> i32 {
    %c0_i32 = arith.constant 0 : i32
    %c0_i32_0 = arith.constant 0 : i32
    return %c0_i32 : i32
  }
  func.func @transform_9(%arg0: i32) -> (i32, i32) {
    %c0_i32 = arith.constant 0 : i32
    %c0_i32_0 = arith.constant 0 : i32
    return %c0_i32, %arg0 : i32, i32
  }
  func.func @transform_10(%arg0: i32) -> (i32, i32) {
    %c0_i32 = arith.constant 0 : i32
    %c0_i32_0 = arith.constant 0 : i32
    return %c0_i32, %arg0 : i32, i32
  }
}

</mosaic_0001>

<llo_original>
// kernel: squeeze.2
$region0: #{squeeze.2}
  %s0 = inlined_call_operand.vmem [shape: f32[16], index: 0, kind: input, shape index: {}]
  %s1 = inlined_call_operand.hbm [shape: f32[2,8,1], index: 1, kind: output, shape index: {}]
  $region1: #{squeeze.2} parent=0
    #allocation0 [shape = 'u8[1024]{0}', space=vmem, size = 0x400, scoped, tag = 'operand span for operand 1']
    #allocation1 [shape = 's32[1]{0}', space=sflag, size = 0x4, scoped, tag = 'scoped memory for squeeze.2']
    #allocation2 [shape = 'u8[4096]{0}', space=vmem, size = 0x1000, scoped, tag = 'scoped mem for output reshape']
    #allocation3 [shape = 'u8[4096]{0}', space=vmem, size = 0x1000, scoped, tag = 'scoped mem for input reshape']
    %2 = vsyncpa [#allocation1], 0
    %s4 = ssub.s32 2, 1
    %v5 = vld [vmem:[%s0] sm:%s4]
    %6 = vst [vmem:[#allocation3] sm:%s4] %v5
    %v7 = vld [vmem:[#allocation3] sm:$0x1]
    %vm8 = vcmask 64512
    %9 = vst.msk [vmem:[#allocation2] sm:$0x1] %vm8, %v7
    %v10 = vld [vmem:[#allocation3] sm:$0x1]
    %11 = vrot.lane.b32.xlu0 %v10, 120
    %v12 = vpop.permute.xlu0 %11
    %vm13 = vcmask 64512
    %s14 = scalar_lea.vmem [#allocation2], 1
    %15 = vst.msk [vmem:[%s14] sm:$0x1] %vm13, %v12
    %s17 = ssub.s32 4, 1
    %v18 = vld [vmem:[#allocation2] sm:%s17]
    %s20 = ssub.s32 4, 1
    %21 = vst [vmem:[#allocation0] sm:%s20] %v18
    %23 = vsyncadd [#allocation1], 0
    %s25 = sshll.u32 [#allocation0], 4
    %s26 = int_to_ptr.vmem [resolvable:$true] %s25
    %s27 = sshll.u32 %s1, 4
    %s28 = int_to_ptr.hbm [resolvable:$true] %s27
    %30 = dma.vmem_to_hbm [thread:$0]  %s26, 32, %s28, [#allocation1]
    %32 = dma.done [#allocation1], 32
    %33 = vsyncpa [#allocation1], 1

// kernel: continuo_forward.1
$region0: #{continuo_forward.1}
  #allocation0 [shape = 'u32[]', space=smem, size = 0x4, offset = 0x4, fixed_abs, tag = 'smem constant byte address 0x4 - core index']
  #allocation1 [shape = 'u32[72,128]{1,0:T(1,128)}', space=vmem, size = 0x9000, scoped, tag = 'internal scratch']
  #allocation2 [shape = 'f32[1]{0:T(128)S(6)}', space=smem, size = 0x200, scoped, tag = 'scoped memory for continuo_forward.1']
  %s0 = inlined_call_operand.vmem [shape: f32[128,16], index: 0, kind: input, shape index: {}]
  %s1 = inlined_call_operand.vmem [shape: f32[128,16], index: 1, kind: input, shape index: {}]
  %s2 = inlined_call_operand.vmem [shape: f32[32,16], index: 2, kind: input, shape index: {}]
  %s3 = inlined_call_operand.vmem [shape: f32[32,16], index: 3, kind: input, shape index: {}]
  %s4 = inlined_call_operand.vmem [shape: f32[32,1], index: 4, kind: input, shape index: {}]
  %s5 = inlined_call_operand.vmem [shape: f32[32,32], index: 5, kind: input, shape index: {}]
  %s6 = inlined_call_operand.vmem [shape: f32[32,1], index: 6, kind: input, shape index: {}]
  %s7 = inlined_call_operand.vmem [shape: f32[1,32], index: 7, kind: input, shape index: {}]
  %s8 = inlined_call_operand.<no memory space> [shape: f32[1], index: 8, kind: input, shape index: {}]
  %s9 = inlined_call_operand.vmem [shape: f32[1,128], index: 9, kind: output, shape index: {0}]
  %s10 = inlined_call_operand.vmem [shape: f32[1,128], index: 10, kind: output, shape index: {1}]
  %11 = xla_tuple %s9, %s10
  %s12 = sld [smem:[#allocation0]]
  $region54: #{continuo_forward.1} parent=0
    _
  %s14 = ssub.s32 1, %s12
  %s15 = scalar_select 0, %s14, %s12
  %16 = sst [smem:[#allocation2]] %s8
  // Predicated region
  $region2: #{continuo_forward.1} parent=0 // pred_check
    _
  $region3: #{continuo_forward.1} parent=0 // pred_check_branch
    %18 = sbr.rel (0) target = $region5
  $region4: #{continuo_forward.1} parent=0 // pred_region
    _
  $region5: #{continuo_forward.1} parent=0 // pred_fallthru
    _
  // Predicated region
  $region6: #{continuo_forward.1} parent=0 // pred_check
    _
  $region7: #{continuo_forward.1} parent=0 // pred_check_branch
    %20 = sbr.rel (0) target = $region9
  $region8: #{continuo_forward.1} parent=0 // pred_region
    _
  $region9: #{continuo_forward.1} parent=0 // pred_fallthru
    _
  // Predicated region
  $region10: #{continuo_forward.1} parent=0 // pred_check
    _
  $region11: #{continuo_forward.1} parent=0 // pred_check_branch
    %22 = sbr.rel (0) target = $region13
  $region12: #{continuo_forward.1} parent=0 // pred_region
    _
  $region13: #{continuo_forward.1} parent=0 // pred_fallthru
    _
  // Predicated region
  $region14: #{continuo_forward.1} parent=0 // pred_check
    _
  $region15: #{continuo_forward.1} parent=0 // pred_check_branch
    %24 = sbr.rel (0) target = $region17
  $region16: #{continuo_forward.1} parent=0 // pred_region
    _
  $region17: #{continuo_forward.1} parent=0 // pred_fallthru
    _
  // Predicated region
  $region18: #{continuo_forward.1} parent=0 // pred_check
    _
  $region19: #{continuo_forward.1} parent=0 // pred_check_branch
    %26 = sbr.rel (0) target = $region21
  $region20: #{continuo_forward.1} parent=0 // pred_region
    _
  $region21: #{continuo_forward.1} parent=0 // pred_fallthru
    _
  // Predicated region
  $region22: #{continuo_forward.1} parent=0 // pred_check
    _
  $region23: #{continuo_forward.1} parent=0 // pred_check_branch
    %28 = sbr.rel (0) target = $region25
  $region24: #{continuo_forward.1} parent=0 // pred_region
    _
  $region25: #{continuo_forward.1} parent=0 // pred_fallthru
    _
  // Predicated region
  $region26: #{continuo_forward.1} parent=0 // pred_check
    _
  $region27: #{continuo_forward.1} parent=0 // pred_check_branch
    %30 = sbr.rel (0) target = $region29
  $region28: #{continuo_forward.1} parent=0 // pred_region
    _
  $region29: #{continuo_forward.1} parent=0 // pred_fallthru
    _
  // Predicated region
  $region30: #{continuo_forward.1} parent=0 // pred_check
    _
  $region31: #{continuo_forward.1} parent=0 // pred_check_branch
    %32 = sbr.rel (0) target = $region33
  $region32: #{continuo_forward.1} parent=0 // pred_region
    _
  $region33: #{continuo_forward.1} parent=0 // pred_fallthru
    _
  // Predicated region
  $region34: #{continuo_forward.1} parent=0 // pred_check
    _
  $region35: #{continuo_forward.1} parent=0 // pred_check_branch
    %34 = sbr.rel (0) target = $region37
  $region36: #{continuo_forward.1} parent=0 // pred_region
    _
  $region37: #{continuo_forward.1} parent=0 // pred_fallthru
    _
  %v35 = vld [vmem:[%s2] sm:$0xff]
  %v36 = vld [vmem:[%s2 + $0x8] sm:$0xff]
  %v37 = vld [vmem:[%s2 + $0x10] sm:$0xff]
  %v38 = vld [vmem:[%s2 + $0x18] sm:$0xff]
  %v39 = vld [vmem:[%s0] sm:$0xff]
  %v40 = vld [vmem:[%s0 + $0x8] sm:$0xff]
  %v41 = vld [vmem:[%s0 + $0x10] sm:$0xff]
  %v42 = vld [vmem:[%s0 + $0x18] sm:$0xff]
  %v43 = vld [vmem:[%s0 + $0x20] sm:$0xff]
  %v44 = vld [vmem:[%s0 + $0x28] sm:$0xff]
  %v45 = vld [vmem:[%s0 + $0x30] sm:$0xff]
  %v46 = vld [vmem:[%s0 + $0x38] sm:$0xff]
  %v47 = vld [vmem:[%s0 + $0x40] sm:$0xff]
  %v48 = vld [vmem:[%s0 + $0x48] sm:$0xff]
  %v49 = vld [vmem:[%s0 + $0x50] sm:$0xff]
  %v50 = vld [vmem:[%s0 + $0x58] sm:$0xff]
  %v51 = vld [vmem:[%s0 + $0x60] sm:$0xff]
  %v52 = vld [vmem:[%s0 + $0x68] sm:$0xff]
  %v53 = vld [vmem:[%s0 + $0x70] sm:$0xff]
  %v54 = vld [vmem:[%s0 + $0x78] sm:$0xff]
  %v55 = vld [vmem:[%s3] sm:$0xff]
  %v56 = vld [vmem:[%s3 + $0x8] sm:$0xff]
  %v57 = vld [vmem:[%s3 + $0x10] sm:$0xff]
  %v58 = vld [vmem:[%s3 + $0x18] sm:$0xff]
  %v59 = vld [vmem:[%s1] sm:$0xff]
  %v60 = vld [vmem:[%s1 + $0x8] sm:$0xff]
  %v61 = vld [vmem:[%s1 + $0x10] sm:$0xff]
  %v62 = vld [vmem:[%s1 + $0x18] sm:$0xff]
  %v63 = vld [vmem:[%s1 + $0x20] sm:$0xff]
  %v64 = vld [vmem:[%s1 + $0x28] sm:$0xff]
  %v65 = vld [vmem:[%s1 + $0x30] sm:$0xff]
  %v66 = vld [vmem:[%s1 + $0x38] sm:$0xff]
  %v67 = vld [vmem:[%s1 + $0x40] sm:$0xff]
  %v68 = vld [vmem:[%s1 + $0x48] sm:$0xff]
  %v69 = vld [vmem:[%s1 + $0x50] sm:$0xff]
  %v70 = vld [vmem:[%s1 + $0x58] sm:$0xff]
  %v71 = vld [vmem:[%s1 + $0x60] sm:$0xff]
  %v72 = vld [vmem:[%s1 + $0x68] sm:$0xff]
  %v73 = vld [vmem:[%s1 + $0x70] sm:$0xff]
  %v74 = vld [vmem:[%s1 + $0x78] sm:$0xff]
  %vm75 = vcmask 130048
  %v77 = vsel %vm75, %v55, 0
  %v80 = vsel %vm75, %v56, 0
  %v83 = vsel %vm75, %v57, 0
  %v86 = vsel %vm75, %v58, 0
  %v89 = vsel %vm75, %v59, 0
  %v92 = vsel %vm75, %v60, 0
  %v95 = vsel %vm75, %v61, 0
  %v98 = vsel %vm75, %v62, 0
  %v101 = vsel %vm75, %v63, 0
  %v104 = vsel %vm75, %v64, 0
  %v107 = vsel %vm75, %v65, 0
  %v110 = vsel %vm75, %v66, 0
  %v113 = vsel %vm75, %v67, 0
  %v116 = vsel %vm75, %v68, 0
  %v119 = vsel %vm75, %v69, 0
  %v122 = vsel %vm75, %v70, 0
  %v125 = vsel %vm75, %v71, 0
  %v128 = vsel %vm75, %v72, 0
  %v131 = vsel %vm75, %v73, 0
  %v134 = vsel %vm75, %v74, 0
  %136 = vmatpush.xpose.msra.mxu0 %v134
  %137 = vmatpush.xpose.msra.mxu0 %v131
  %138 = vmatpush.xpose.msra.mxu0 %v128
  %139 = vmatpush.xpose.msra.mxu0 %v125
  %140 = vmatpush.xpose.msra.mxu0 %v122
  %141 = vmatpush.xpose.msra.mxu0 %v119
  %142 = vmatpush.xpose.msra.mxu0 %v116
  %143 = vmatpush.xpose.msra.mxu0 %v113
  %144 = vmatpush.xpose.msra.mxu0 %v110
  %145 = vmatpush.xpose.msra.mxu0 %v107
  %146 = vmatpush.xpose.msra.mxu0 %v104
  %147 = vmatpush.xpose.msra.mxu0 %v101
  %148 = vmatpush.xpose.msra.mxu0 %v98
  %149 = vmatpush.xpose.msra.mxu0 %v95
  %150 = vmatpush.xpose.msra.mxu0 %v92
  %151 = vmatpush.xpose.msra.mxu0 %v89
  %152 = vmatmul.f32.gmra.mxu0 %v77
  %v153 = vpop.f32.mrf.mxu0
  %v154 = vadd.f32 0.0, %v153
  %155 = vmatmul.f32.gmra.mxu0 %v80
  %v156 = vpop.f32.mrf.mxu0
  %v157 = vadd.f32 0.0, %v156
  %158 = vmatmul.f32.gmra.mxu0 %v83
  %v159 = vpop.f32.mrf.mxu0
  %v160 = vadd.f32 0.0, %v159
  %161 = vmatmul.f32.gmra.mxu0 %v86
  %v162 = vpop.f32.mrf.mxu0
  %v163 = vadd.f32 0.0, %v162
  %164 = vdwg.mxu0
  %v166 = vsel %vm75, %v35, 0
  %v169 = vsel %vm75, %v36, 0
  %v172 = vsel %vm75, %v37, 0
  %v175 = vsel %vm75, %v38, 0
  %v178 = vsel %vm75, %v39, 0
  %v181 = vsel %vm75, %v40, 0
  %v184 = vsel %vm75, %v41, 0
  %v187 = vsel %vm75, %v42, 0
  %v190 = vsel %vm75, %v43, 0
  %v193 = vsel %vm75, %v44, 0
  %v196 = vsel %vm75, %v45, 0
  %v199 = vsel %vm75, %v46, 0
  %v202 = vsel %vm75, %v47, 0
  %v205 = vsel %vm75, %v48, 0
  %v208 = vsel %vm75, %v49, 0
  %v211 = vsel %vm75, %v50, 0
  %v214 = vsel %vm75, %v51, 0
  %v217 = vsel %vm75, %v52, 0
  %v220 = vsel %vm75, %v53, 0
  %v223 = vsel %vm75, %v54, 0
  %225 = vmatpush.xpose.msra.mxu0 %v223
  %226 = vmatpush.xpose.msra.mxu0 %v220
  %227 = vmatpush.xpose.msra.mxu0 %v217
  %228 = vmatpush.xpose.msra.mxu0 %v214
  %229 = vmatpush.xpose.msra.mxu0 %v211
  %230 = vmatpush.xpose.msra.mxu0 %v208
  %231 = vmatpush.xpose.msra.mxu0 %v205
  %232 = vmatpush.xpose.msra.mxu0 %v202
  %233 = vmatpush.xpose.msra.mxu0 %v199
  %234 = vmatpush.xpose.msra.mxu0 %v196
  %235 = vmatpush.xpose.msra.mxu0 %v193
  %236 = vmatpush.xpose.msra.mxu0 %v190
  %237 = vmatpush.xpose.msra.mxu0 %v187
  %238 = vmatpush.xpose.msra.mxu0 %v184
  %239 = vmatpush.xpose.msra.mxu0 %v181
  %240 = vmatpush.xpose.msra.mxu0 %v178
  %241 = vmatmul.f32.gmra.mxu0 %v166
  %v242 = vpop.f32.mrf.mxu0
  %v243 = vadd.f32 %v154, %v242
  %244 = vmatmul.f32.gmra.mxu0 %v169
  %v245 = vpop.f32.mrf.mxu0
  %v246 = vadd.f32 %v157, %v245
  %247 = vmatmul.f32.gmra.mxu0 %v172
  %v248 = vpop.f32.mrf.mxu0
  %v249 = vadd.f32 %v160, %v248
  %250 = vmatmul.f32.gmra.mxu0 %v175
  %v251 = vpop.f32.mrf.mxu0
  %v252 = vadd.f32 %v163, %v251
  %253 = vdwg.mxu0
  %v254 = vld [vmem:[%s4] sm:$0xff]
  %v255 = vld [vmem:[%s4 + $0x8] sm:$0xff]
  %v256 = vld [vmem:[%s4 + $0x10] sm:$0xff]
  %v257 = vld [vmem:[%s4 + $0x18] sm:$0xff]
  %259 = vset.pattern.permute.xlu0 0
  %260 = vperm.xlu0 %259, %v254
  %v261 = vpop.permute.xlu0 %260
  %264 = vset.pattern.permute.xlu0 0
  %265 = vperm.xlu0 %264, %v255
  %v266 = vpop.permute.xlu0 %265
  %269 = vset.pattern.permute.xlu0 0
  %270 = vperm.xlu0 %269, %v256
  %v271 = vpop.permute.xlu0 %270
  %274 = vset.pattern.permute.xlu0 0
  %275 = vperm.xlu0 %274, %v257
  %v276 = vpop.permute.xlu0 %275
  %v278 = vadd.f32 %v243, %v261
  %v279 = vadd.f32 %v246, %v266
  %v280 = vadd.f32 %v249, %v271
  %v281 = vadd.f32 %v252, %v276
  %vm282 = vcmp.gt.f32.partialorder %v278, 0.0
  %vm283 = vcmp.gt.f32.partialorder %v279, 0.0
  %vm284 = vcmp.gt.f32.partialorder %v280, 0.0
  %vm285 = vcmp.gt.f32.partialorder %v281, 0.0
  %v286 = vmul.f32 %v278, 1.442695
  %v287 = vpow.pop %v286
  %v288 = vmul.f32 %v279, 1.442695
  %v289 = vpow.pop %v288
  %v290 = vmul.f32 %v280, 1.442695
  %v291 = vpow.pop %v290
  %v292 = vmul.f32 %v281, 1.442695
  %v293 = vpow.pop %v292
  %v294 = vsub.f32 %v287, 1.0
  %v295 = vsub.f32 %v289, 1.0
  %v296 = vsub.f32 %v291, 1.0
  %v297 = vsub.f32 %v293, 1.0
  %v298 = vsel %vm282, %v278, %v294
  %v299 = vsel %vm283, %v279, %v295
  %v300 = vsel %vm284, %v280, %v296
  %v301 = vsel %vm285, %v281, %v297
  %v302 = vld [vmem:[%s5] sm:$0xff]
  %v303 = vld [vmem:[%s5 + $0x8] sm:$0xff]
  %v304 = vld [vmem:[%s5 + $0x10] sm:$0xff]
  %v305 = vld [vmem:[%s5 + $0x18] sm:$0xff]
  %v306 = vld [vmem:[%s6] sm:$0xff]
  %v307 = vld [vmem:[%s6 + $0x8] sm:$0xff]
  %v308 = vld [vmem:[%s6 + $0x10] sm:$0xff]
  %v309 = vld [vmem:[%s6 + $0x18] sm:$0xff]
  %311 = vset.pattern.permute.xlu0 0
  %312 = vperm.xlu0 %311, %v306
  %v313 = vpop.permute.xlu0 %312
  %316 = vset.pattern.permute.xlu0 0
  %317 = vperm.xlu0 %316, %v307
  %v318 = vpop.permute.xlu0 %317
  %321 = vset.pattern.permute.xlu0 0
  %322 = vperm.xlu0 %321, %v308
  %v323 = vpop.permute.xlu0 %322
  %326 = vset.pattern.permute.xlu0 0
  %327 = vperm.xlu0 %326, %v309
  %v328 = vpop.permute.xlu0 %327
  %vm330 = vcmask 261120
  %v332 = vsel %vm330, %v302, 0
  %v335 = vsel %vm330, %v303, 0
  %v338 = vsel %vm330, %v304, 0
  %v341 = vsel %vm330, %v305, 0
  %343 = vmatpush.msra.mxu0 0.0
  %344 = vmatpush.msra.mxu0 0.0
  %345 = vmatpush.msra.mxu0 0.0
  %346 = vmatpush.msra.mxu0 0.0
  %347 = vmatpush.msra.mxu0 0.0
  %348 = vmatpush.msra.mxu0 0.0
  %349 = vmatpush.msra.mxu0 0.0
  %350 = vmatpush.msra.mxu0 0.0
  %351 = vmatpush.msra.mxu0 0.0
  %352 = vmatpush.msra.mxu0 0.0
  %353 = vmatpush.msra.mxu0 0.0
  %354 = vmatpush.msra.mxu0 0.0
  %355 = vmatpush.msra.mxu0 %v301
  %356 = vmatpush.msra.mxu0 %v300
  %357 = vmatpush.msra.mxu0 %v299
  %358 = vmatpush.msra.mxu0 %v298
  %359 = vmatmul.f32.gmra.mxu0 %v332
  %v360 = vpop.f32.mrf.mxu0
  %v361 = vadd.f32 %v313, %v360
  %362 = vmatmul.f32.gmra.mxu0 %v335
  %v363 = vpop.f32.mrf.mxu0
  %v364 = vadd.f32 %v318, %v363
  %365 = vmatmul.f32.gmra.mxu0 %v338
  %v366 = vpop.f32.mrf.mxu0
  %v367 = vadd.f32 %v323, %v366
  %368 = vmatmul.f32.gmra.mxu0 %v341
  %v369 = vpop.f32.mrf.mxu0
  %v370 = vadd.f32 %v328, %v369
  %371 = vdwg.mxu0
  %vm372 = vcmp.gt.f32.partialorder %v361, 0.0
  %vm373 = vcmp.gt.f32.partialorder %v364, 0.0
  %vm374 = vcmp.gt.f32.partialorder %v367, 0.0
  %vm375 = vcmp.gt.f32.partialorder %v370, 0.0
  %v376 = vmul.f32 %v361, 1.442695
  %v377 = vpow.pop %v376
  %v378 = vmul.f32 %v364, 1.442695
  %v379 = vpow.pop %v378
  %v380 = vmul.f32 %v367, 1.442695
  %v381 = vpow.pop %v380
  %v382 = vmul.f32 %v370, 1.442695
  %v383 = vpow.pop %v382
  %v384 = vsub.f32 %v377, 1.0
  %v385 = vsub.f32 %v379, 1.0
  %v386 = vsub.f32 %v381, 1.0
  %v387 = vsub.f32 %v383, 1.0
  %v388 = vsel %vm372, %v361, %v384
  %v389 = vsel %vm373, %v364, %v385
  %v390 = vsel %vm374, %v367, %v386
  %v391 = vsel %vm375, %v370, %v387
  %v392 = vld [vmem:[%s7] sm:$0x1]
  %s393 = sld [smem:[#allocation2]]
  %v394 = vstv %s393
  %v396 = vsel %vm330, %v392, 0
  %398 = vmatpush.msra.mxu0 0.0
  %399 = vmatpush.msra.mxu0 0.0
  %400 = vmatpush.msra.mxu0 0.0
  %401 = vmatpush.msra.mxu0 0.0
  %402 = vmatpush.msra.mxu0 0.0
  %403 = vmatpush.msra.mxu0 0.0
  %404 = vmatpush.msra.mxu0 0.0
  %405 = vmatpush.msra.mxu0 0.0
  %406 = vmatpush.msra.mxu0 0.0
  %407 = vmatpush.msra.mxu0 0.0
  %408 = vmatpush.msra.mxu0 0.0
  %409 = vmatpush.msra.mxu0 0.0
  %410 = vmatpush.msra.mxu0 %v391
  %411 = vmatpush.msra.mxu0 %v390
  %412 = vmatpush.msra.mxu0 %v389
  %413 = vmatpush.msra.mxu0 %v388
  %414 = vmatmul.f32.gmra.mxu0 %v396
  %v415 = vpop.f32.mrf.mxu0
  %v416 = vadd.f32 %v394, %v415
  %417 = vdwg.mxu0
  %418 = vst [vmem:[%s9] sm:$0x1] %v416
  %v419 = vmul.f32 %v416, 0.5
  %v420 = vtanh.pop %v419
  %v421 = vmul.f32 %v420, 0.5
  %v422 = vadd.f32 %v421, 0.5
  %423 = vst [vmem:[%s10] sm:$0x1] %v422
  // Predicated region
  $region38: #{continuo_forward.1} parent=0 // pred_check
    _
  $region39: #{continuo_forward.1} parent=0 // pred_check_branch
    %425 = sbr.rel (0) target = $region41
  $region40: #{continuo_forward.1} parent=0 // pred_region
    _
  $region41: #{continuo_forward.1} parent=0 // pred_fallthru
    _
  // Predicated region
  $region42: #{continuo_forward.1} parent=0 // pred_check
    _
  $region43: #{continuo_forward.1} parent=0 // pred_check_branch
    %427 = sbr.rel (0) target = $region45
  $region44: #{continuo_forward.1} parent=0 // pred_region
    _
  $region45: #{continuo_forward.1} parent=0 // pred_fallthru
    _
  // Predicated region
  $region46: #{continuo_forward.1} parent=0 // pred_check
    _
  $region47: #{continuo_forward.1} parent=0 // pred_check_branch
    %429 = sbr.rel (0) target = $region49
  $region48: #{continuo_forward.1} parent=0 // pred_region
    _
  $region49: #{continuo_forward.1} parent=0 // pred_fallthru
    _
  // Predicated region
  $region50: #{continuo_forward.1} parent=0 // pred_check
    _
  $region51: #{continuo_forward.1} parent=0 // pred_check_branch
    %431 = sbr.rel (0) target = $region53
  $region52: #{continuo_forward.1} parent=0 // pred_region
    _
  $region53: #{continuo_forward.1} parent=0 // pred_fallthru
    _

</llo_original>
